<compile_context>
chip_gen: v7x
topology: tpu7x:2x2x1
jax: 0.10.0
libtpu: 0.0.40
codegen_flags: <defaults>
</compile_context>

<pallas_src>
import jax
import jax.numpy as jnp
from jax import lax
from jax.experimental import pallas as pl
from jax.experimental.pallas import tpu as pltpu


def _round_up(x: int, m: int) -> int:
    return ((x + m - 1) // m) * m


def _make_kernel(P: int, tm: int, tn: int, need_mask: bool):
    def kernel(bi_ref, bj_ref, xi_ref, xj_ref, o_ref, gram_acc, sqi_acc, sqj_acc):
        p = pl.program_id(0)
        k = pl.program_id(1)
        nk = pl.num_programs(1)
        bi = bi_ref[p]
        bj = bj_ref[p]

        @pl.when(k == 0)
        def _init():
            gram_acc[...] = jnp.zeros_like(gram_acc)
            sqi_acc[...] = jnp.zeros_like(sqi_acc)
            sqj_acc[...] = jnp.zeros_like(sqj_acc)

        xi = xi_ref[...]
        xj = xj_ref[...]
        # Gram tile on the MXU: contract the last (lane) axis of both
        # operands -> no explicit transpose, native input dtype, f32 acc.
        gram_acc[...] += lax.dot_general(
            xi, xj, (((1,), (1,)), ((), ())),
            preferred_element_type=jnp.float32)
        xi32 = xi.astype(jnp.float32)
        xj32 = xj.astype(jnp.float32)
        # ||x_i||^2 as a (tm, 1) sublane vector (VPU lane reduce, f32).
        sqi_acc[...] += jnp.sum(xi32 * xi32, axis=1, keepdims=True)
        # ||x_j||^2 directly as a (1, tn) lane vector via a ones-matmul,
        # avoiding a per-tile (tn,1)->(1,tn) XLU transpose.
        ones_row = jnp.ones((1, xj.shape[1]), jnp.float32)
        sqj_acc[...] += lax.dot_general(
            ones_row, xj32 * xj32, (((1,), (1,)), ((), ())),
            preferred_element_type=jnp.float32)

        @pl.when(k == nk - 1)
        def _finalize():
            # ||xi||^2 + ||xj||^2 - 2<xi,xj>, combined in f32.
            d2 = sqi_acc[...] + sqj_acc[...] - 2.0 * gram_acc[...]
            d2 = jnp.maximum(d2, 0.0)     # clamp cancellation negatives
            dist = jnp.sqrt(d2)
            rows = lax.broadcasted_iota(jnp.int32, (tm, tn), 0)
            cols = lax.broadcasted_iota(jnp.int32, (tm, tn), 1)
            # Self-distances are exactly zero; kill cancellation residue.
            diag = jnp.logical_and(bi == bj, rows == cols)
            dist = jnp.where(diag, 0.0, dist)
            if need_mask:
                valid = jnp.logical_and(bi * tm + rows < P, bj * tn + cols < P)
                dist = jnp.where(valid, dist, 0.0)
            # Off-diagonal blocks stand in for their mirrored block too.
            weight = jnp.where(bj > bi, 2.0, 1.0).astype(jnp.float32)
            o_ref[0, 0] = weight * jnp.sum(dist)

    return kernel


def dissimilar_loss(protos: jax.Array, *, tile_p: int = 256, tile_k: int = 512):
    """protos: (P, D). Returns scalar f32 loss = -mean(cdist(protos, protos))."""
    assert protos.ndim == 2, "expected (P, D) prototypes"
    assert tile_p % 8 == 0 and tile_k % 128 == 0
    P, D = protos.shape

    # Tile sizes: full (padded) extent for small problems, capped for large.
    tm = tile_p if P > tile_p else _round_up(P, 8)
    tn = tm
    tk = tile_k if D > tile_k else _round_up(D, 128)

    P_pad = _round_up(P, tm)
    D_pad = _round_up(D, tk)
    x = protos
    if (P_pad, D_pad) != (P, D):
        # D zero-padding is harmless; padded P rows are masked in-kernel.
        x = jnp.pad(x, ((0, P_pad - P), (0, D_pad - D)))

    gi = P_pad // tm
    gk = D_pad // tk

    # Upper-triangular block-pair list (scalar-prefetched into SMEM) so the
    # grid never visits (and never DMAs) redundant lower-triangle blocks.
    pairs = [(i, j) for i in range(gi) for j in range(gi) if j >= i]
    n_pairs = len(pairs)
    bi_arr = jnp.asarray([p[0] for p in pairs], dtype=jnp.int32)
    bj_arr = jnp.asarray([p[1] for p in pairs], dtype=jnp.int32)

    itemsize = jnp.dtype(protos.dtype).itemsize
    cost = pl.CostEstimate(
        flops=2 * n_pairs * tm * tn * D_pad + 4 * n_pairs * tm * tn,
        transcendentals=n_pairs * tm * tn,
        bytes_accessed=2 * n_pairs * tm * D_pad * itemsize + n_pairs * 4,
    )

    kernel = _make_kernel(P, tm, tn, need_mask=(P_pad != P))

    partials = pl.pallas_call(
        kernel,
        out_shape=jax.ShapeDtypeStruct((n_pairs, 1), jnp.float32),
        grid_spec=pltpu.PrefetchScalarGridSpec(
            num_scalar_prefetch=2,
            grid=(n_pairs, gk),
            in_specs=[
                pl.BlockSpec((tm, tk), lambda p, k, bi, bj: (bi[p], k)),  # x_i tile
                pl.BlockSpec((tn, tk), lambda p, k, bi, bj: (bj[p], k)),  # x_j tile
            ],
            out_specs=pl.BlockSpec((1, 1), lambda p, k, bi, bj: (p, 0),
                                   memory_space=pltpu.SMEM),
            scratch_shapes=[
                pltpu.VMEM((tm, tn), jnp.float32),   # Gram accumulator
                pltpu.VMEM((tm, 1), jnp.float32),    # ||x_i||^2
                pltpu.VMEM((1, tn), jnp.float32),    # ||x_j||^2
            ],
        ),
        compiler_params=pltpu.CompilerParams(
            dimension_semantics=("parallel", "arbitrary"),
            vmem_limit_bytes=64 * 1024 * 1024,
        ),
        cost_estimate=cost,
    )(bi_arr, bj_arr, x, x)

    return -(jnp.sum(partials) / jnp.float32(P * P))


def _reference(protos):
    diff = protos[:, None, :] - protos[None, :, :]
    return -jnp.mean(jnp.sqrt(jnp.sum(diff * diff, axis=-1)))


if __name__ == "__main__":
    key = jax.random.PRNGKey(0)
    k1, k2 = jax.random.split(key)

    # Shipped shape: 8 prototypes of dim 32 (single-block path).
    P, D = 8, 32
    protos = jax.random.normal(k1, (P, D), dtype=jnp.float32)
    loss = dissimilar_loss(protos)
    jax.block_until_ready(loss)
    ref = _reference(protos)
    assert jnp.allclose(loss, ref, atol=1e-4, rtol=1e-4), (loss, ref)

    # Small check exercising the tiled / padded / symmetric multi-block path
    # (block-pair grid with masking, k-accumulation, off-diag weight 2).
    P2, D2 = 40, 160
    protos2 = jax.random.normal(k2, (P2, D2), dtype=jnp.float32)
    loss2 = dissimilar_loss(protos2, tile_p=16, tile_k=128)
    jax.block_until_ready(loss2)
    ref2 = _reference(protos2)
    assert jnp.allclose(loss2, ref2, atol=1e-3, rtol=1e-3), (loss2, ref2)

    print("KERNEL_OK")
</pallas_src>

<mosaic_0001>
module attributes {stable_mosaic.version = 11 : i64} {
  func.func @kernel(%arg0: i32, %arg1: i32, %arg2: memref<1xi32, #tpu.memory_space<smem>>, %arg3: memref<1xi32, #tpu.memory_space<smem>>, %arg4: memref<8x128xf32, #tpu.memory_space<vmem>>, %arg5: memref<8x128xf32, #tpu.memory_space<vmem>>, %arg6: memref<1x1xf32, #tpu.memory_space<smem>>, %arg7: memref<8x8xf32, #tpu.memory_space<vmem>>, %arg8: memref<8x1xf32, #tpu.memory_space<vmem>>, %arg9: memref<1x8xf32, #tpu.memory_space<vmem>>) attributes {dimension_semantics = [#tpu.dimension_semantics<parallel>, #tpu.dimension_semantics<arbitrary>], iteration_bounds = array<i64: 1, 1>, scalar_prefetch = 2 : i64, scratch_operands = 3 : i64, tpu.core_type = #tpu.core_type<tc>, window_params = [{transform_indices = @transform_0, window_bounds = array<i64: 8, 128>}, {transform_indices = @transform_1, window_bounds = array<i64: 8, 128>}, {transform_indices = @transform_2, window_bounds = array<i64: 1, 1>}]} {
    %0 = arith.index_cast %arg0 : i32 to index
    %1 = memref.load %arg2[%0] : memref<1xi32, #tpu.memory_space<smem>>
    %2 = arith.index_cast %arg0 : i32 to index
    %3 = memref.load %arg3[%2] : memref<1xi32, #tpu.memory_space<smem>>
    %c0_i32 = arith.constant 0 : i32
    %4 = arith.cmpi eq, %arg1, %c0_i32 : i32
    %5 = arith.extui %4 : i1 to i32
    %c0_i32_0 = arith.constant 0 : i32
    %6 = arith.cmpi ne, %5, %c0_i32_0 : i32
    scf.if %6 {
      %cst_21 = arith.constant 0.000000e+00 : f32
      %28 = vector.broadcast %cst_21 : f32 to vector<8x8xf32>
      %c0_22 = arith.constant 0 : index
      %c0_23 = arith.constant 0 : index
      %29 = vector.load %arg7[%c0_22, %c0_23] : memref<8x8xf32, #tpu.memory_space<vmem>>, vector<8x8xf32>
      tpu.vector_store %arg7[%c0_22, %c0_23], %28 {strides = array<i32>} : memref<8x8xf32, #tpu.memory_space<vmem>>, vector<8x8xf32>,
      %cst_24 = arith.constant 0.000000e+00 : f32
      %30 = vector.broadcast %cst_24 : f32 to vector<8x1xf32>
      %c0_25 = arith.constant 0 : index
      %c0_26 = arith.constant 0 : index
      %31 = vector.load %arg8[%c0_25, %c0_26] : memref<8x1xf32, #tpu.memory_space<vmem>>, vector<8x1xf32>
      tpu.vector_store %arg8[%c0_25, %c0_26], %30 {strides = array<i32>} : memref<8x1xf32, #tpu.memory_space<vmem>>, vector<8x1xf32>,
      %cst_27 = arith.constant 0.000000e+00 : f32
      %32 = vector.broadcast %cst_27 : f32 to vector<1x8xf32>
      %c0_28 = arith.constant 0 : index
      %c0_29 = arith.constant 0 : index
      %33 = vector.load %arg9[%c0_28, %c0_29] : memref<1x8xf32, #tpu.memory_space<vmem>>, vector<1x8xf32>
      tpu.vector_store %arg9[%c0_28, %c0_29], %32 {strides = array<i32>} : memref<1x8xf32, #tpu.memory_space<vmem>>, vector<1x8xf32>,
    } else {
    }
    %c0 = arith.constant 0 : index
    %c0_1 = arith.constant 0 : index
    %7 = vector.load %arg4[%c0, %c0_1] : memref<8x128xf32, #tpu.memory_space<vmem>>, vector<8x128xf32>
    %c0_2 = arith.constant 0 : index
    %c0_3 = arith.constant 0 : index
    %8 = vector.load %arg5[%c0_2, %c0_3] : memref<8x128xf32, #tpu.memory_space<vmem>>, vector<8x128xf32>
    %c0_4 = arith.constant 0 : index
    %c0_5 = arith.constant 0 : index
    %9 = vector.load %arg7[%c0_4, %c0_5] : memref<8x8xf32, #tpu.memory_space<vmem>>, vector<8x8xf32>
    %cst = arith.constant dense<0.000000e+00> : vector<8x8xf32>
    %10 = tpu.matmul %7, %8, %cst {dimension_numbers = #tpu.dot_dimension_numbers<[1], [1], [0], [0], [0, 0, 1, 0], [], []>} : vector<8x128xf32>, vector<8x128xf32>, vector<8x8xf32> -> vector<8x8xf32>
    %11 = arith.addf %9, %10 : vector<8x8xf32>
    %c0_6 = arith.constant 0 : index
    %c0_7 = arith.constant 0 : index
    %12 = vector.load %arg7[%c0_6, %c0_7] : memref<8x8xf32, #tpu.memory_space<vmem>>, vector<8x8xf32>
    tpu.vector_store %arg7[%c0_6, %c0_7], %11 {strides = array<i32>} : memref<8x8xf32, #tpu.memory_space<vmem>>, vector<8x8xf32>,
    %c0_8 = arith.constant 0 : index
    %c0_9 = arith.constant 0 : index
    %13 = vector.load %arg8[%c0_8, %c0_9] : memref<8x1xf32, #tpu.memory_space<vmem>>, vector<8x1xf32>
    %14 = arith.mulf %7, %7 : vector<8x128xf32>
    %cst_10 = arith.constant dense<0.000000e+00> : vector<8xf32>
    %15 = vector.multi_reduction <add>, %14, %cst_10 [1] : vector<8x128xf32> to vector<8xf32>
    %16 = vector.shape_cast %15 : vector<8xf32> to vector<8x1xf32>
    %17 = arith.addf %13, %16 : vector<8x1xf32>
    %c0_11 = arith.constant 0 : index
    %c0_12 = arith.constant 0 : index
    %18 = vector.load %arg8[%c0_11, %c0_12] : memref<8x1xf32, #tpu.memory_space<vmem>>, vector<8x1xf32>
    tpu.vector_store %arg8[%c0_11, %c0_12], %17 {strides = array<i32>} : memref<8x1xf32, #tpu.memory_space<vmem>>, vector<8x1xf32>,
    %cst_13 = arith.constant 1.000000e+00 : f32
    %19 = vector.broadcast %cst_13 : f32 to vector<1x128xf32>
    %c0_14 = arith.constant 0 : index
    %c0_15 = arith.constant 0 : index
    %20 = vector.load %arg9[%c0_14, %c0_15] : memref<1x8xf32, #tpu.memory_space<vmem>>, vector<1x8xf32>
    %21 = arith.mulf %8, %8 : vector<8x128xf32>
    %cst_16 = arith.constant dense<0.000000e+00> : vector<1x8xf32>
    %22 = tpu.matmul %19, %21, %cst_16 {dimension_numbers = #tpu.dot_dimension_numbers<[1], [1], [0], [0], [0, 0, 1, 0], [], []>} : vector<1x128xf32>, vector<8x128xf32>, vector<1x8xf32> -> vector<1x8xf32>
    %23 = arith.addf %20, %22 : vector<1x8xf32>
    %c0_17 = arith.constant 0 : index
    %c0_18 = arith.constant 0 : index
    %24 = vector.load %arg9[%c0_17, %c0_18] : memref<1x8xf32, #tpu.memory_space<vmem>>, vector<1x8xf32>
    tpu.vector_store %arg9[%c0_17, %c0_18], %23 {strides = array<i32>} : memref<1x8xf32, #tpu.memory_space<vmem>>, vector<1x8xf32>,
    %c0_i32_19 = arith.constant 0 : i32
    %25 = arith.cmpi eq, %arg1, %c0_i32_19 : i32
    %26 = arith.extui %25 : i1 to i32
    %c0_i32_20 = arith.constant 0 : i32
    %27 = arith.cmpi ne, %26, %c0_i32_20 : i32
    scf.if %27 {
      %c0_21 = arith.constant 0 : index
      %c0_22 = arith.constant 0 : index
      %28 = vector.load %arg8[%c0_21, %c0_22] : memref<8x1xf32, #tpu.memory_space<vmem>>, vector<8x1xf32>
      %c0_23 = arith.constant 0 : index
      %c0_24 = arith.constant 0 : index
      %29 = vector.load %arg9[%c0_23, %c0_24] : memref<1x8xf32, #tpu.memory_space<vmem>>, vector<1x8xf32>
      %30 = vector.broadcast %28 : vector<8x1xf32> to vector<8x8xf32>
      %31 = vector.broadcast %29 : vector<1x8xf32> to vector<8x8xf32>
      %32 = arith.addf %30, %31 : vector<8x8xf32>
      %c0_25 = arith.constant 0 : index
      %c0_26 = arith.constant 0 : index
      %33 = vector.load %arg7[%c0_25, %c0_26] : memref<8x8xf32, #tpu.memory_space<vmem>>, vector<8x8xf32>
      %cst_27 = arith.constant 2.000000e+00 : f32
      %34 = vector.broadcast %cst_27 : f32 to vector<8x8xf32>
      %35 = arith.mulf %34, %33 : vector<8x8xf32>
      %36 = arith.subf %32, %35 : vector<8x8xf32>
      %cst_28 = arith.constant 0.000000e+00 : f32
      %37 = vector.broadcast %cst_28 : f32 to vector<8x8xf32>
      %38 = arith.maximumf %36, %37 : vector<8x8xf32>
      %39 = math.sqrt %38 : vector<8x8xf32>
      %40 = tpu.iota {dimensions = array<i32: 0>} : vector<8x8xi32>
      %41 = tpu.iota {dimensions = array<i32: 1>} : vector<8x8xi32>
      %42 = arith.cmpi eq, %1, %3 : i32
      %43 = arith.cmpi eq, %40, %41 : vector<8x8xi32>
      %44 = vector.broadcast %42 : i1 to vector<8x8xi1>
      %45 = arith.andi %44, %43 : vector<8x8xi1>
      %cst_29 = arith.constant 0.000000e+00 : f32
      %46 = vector.broadcast %cst_29 : f32 to vector<8x8xf32>
      %47 = arith.select %45, %46, %39 : vector<8x8xi1>, vector<8x8xf32>
      %48 = arith.cmpi sgt, %3, %1 : i32
      %cst_30 = arith.constant 2.000000e+00 : f32
      %cst_31 = arith.constant 1.000000e+00 : f32
      %49 = arith.select %48, %cst_30, %cst_31 : f32
      %50 = vector.shape_cast %47 : vector<8x8xf32> to vector<1x8x8xf32>
      %cst_32 = arith.constant dense<0.000000e+00> : vector<1xf32>
      %51 = vector.multi_reduction <add>, %50, %cst_32 [1, 2] : vector<1x8x8xf32> to vector<1xf32>
      %52 = vector.shape_cast %51 : vector<1xf32> to vector<1x1x1xf32>
      %53 = vector.extract %52[0, 0, 0] : f32 from vector<1x1x1xf32>
      %54 = arith.mulf %49, %53 : f32
      %c0_33 = arith.constant 0 : index
      %c0_34 = arith.constant 0 : index
      %55 = memref.load %arg6[%c0_33, %c0_34] : memref<1x1xf32, #tpu.memory_space<smem>>
      memref.store %54, %arg6[%c0_33, %c0_34] : memref<1x1xf32, #tpu.memory_space<smem>>
    } else {
    }
    return
  }
  func.func @transform_0(%arg0: i32, %arg1: i32, %arg2: memref<1xi32, #tpu.memory_space<smem>>, %arg3: memref<1xi32, #tpu.memory_space<smem>>) -> (i32, i32) {
    %0 = arith.index_cast %arg0 : i32 to index
    %1 = memref.load %arg2[%0] : memref<1xi32, #tpu.memory_space<smem>>
    %c0_i32 = arith.constant 0 : i32
    return %1, %arg1 : i32, i32
  }
  func.func @transform_1(%arg0: i32, %arg1: i32, %arg2: memref<1xi32, #tpu.memory_space<smem>>, %arg3: memref<1xi32, #tpu.memory_space<smem>>) -> (i32, i32) {
    %0 = arith.index_cast %arg0 : i32 to index
    %1 = memref.load %arg3[%0] : memref<1xi32, #tpu.memory_space<smem>>
    %c0_i32 = arith.constant 0 : i32
    return %1, %arg1 : i32, i32
  }
  func.func @transform_2(%arg0: i32, %arg1: i32, %arg2: memref<1xi32, #tpu.memory_space<smem>>, %arg3: memref<1xi32, #tpu.memory_space<smem>>) -> (i32, i32) {
    %c0_i32 = arith.constant 0 : i32
    %c0_i32_0 = arith.constant 0 : i32
    return %arg0, %c0_i32 : i32, i32
  }
}

</mosaic_0001>

<llo_original>
// kernel: tpu_custom_call.1
$region0: #{tpu_custom_call.1}
  #allocation0 [shape = 'u32[]', space=smem, size = 0x4, offset = 0x4, fixed_abs, tag = 'smem constant byte address 0x4 - core index']
  #allocation1 [shape = 'u32[144,128]{1,0:T(1,128)}', space=vmem, size = 0x12000, scoped, tag = 'internal scratch']
  #allocation2 [shape = 'f32[8,8]{1,0:T(8,128)}', space=vmem, size = 0x1000, scoped, tag = 'scratch operand']
  #allocation3 [shape = 'f32[8,1]{1,0:T(8,128)}', space=vmem, size = 0x1000, scoped, tag = 'scratch operand']
  #allocation4 [shape = 'f32[1,8]{1,0:T(1,128)}', space=vmem, size = 0x200, scoped, tag = 'scratch operand']
  #allocation5 [shape = 's32[1]{0}', space=sflag, size = 0x4, scoped, tag = 'scoped memory for tpu_custom_call.1']
  #allocation6 [shape = 's32[1]{0:T(128)S(6)}', space=smem, size = 0x200, scoped, tag = 'prefetched SMEM operand 0']
  #allocation7 [shape = 's32[1]{0:T(128)S(6)}', space=smem, size = 0x200, scoped, tag = 'prefetched SMEM operand 1']
  %s0 = inlined_call_operand.<no memory space> [shape: s32[1], index: 0, kind: input, shape index: {}]
  %s1 = inlined_call_operand.<no memory space> [shape: s32[1], index: 1, kind: input, shape index: {}]
  %s2 = inlined_call_operand.hbm [shape: f32[8,128], index: 2, kind: input, shape index: {}]
  %s3 = inlined_call_operand.hbm [shape: f32[8,128], index: 3, kind: input, shape index: {}]
  %s4 = inlined_call_operand.hbm [shape: f32[1,1], index: 4, kind: output, shape index: {}]
  %s5 = sld [smem:[#allocation0]]
  $region34: #{tpu_custom_call.1} parent=0
    _
  %s7 = ssub.s32 1, %s5
  %s8 = scalar_select 0, %s7, %s5
  %9 = sst [smem:[#allocation6]] %s0
  %10 = sst [smem:[#allocation7]] %s1
  $region1: #{tpu_custom_call.1} parent=0
    #allocation8 [shape = 'u8[4096]{0}', space=vmem, size = 0x1000, scoped, tag = 'input window, operand 2, single buffered']
    #allocation9 [shape = 's32[1]{0}', space=sflag, size = 0x4, scoped, tag = 'scoped memory for tpu_custom_call.1']
    #allocation10 [shape = 's32[1]{0}', space=sflag, size = 0x4, scoped, tag = 'scoped memory for tpu_custom_call.1']
    #allocation11 [shape = 'u8[4096]{0}', space=vmem, size = 0x1000, scoped, tag = 'input window, operand 3, single buffered']
    #allocation12 [shape = 's32[1]{0}', space=sflag, size = 0x4, scoped, tag = 'scoped memory for tpu_custom_call.1']
    #allocation13 [shape = 'u8[512]{0}', space=smem, size = 0x200, scoped, tag = 'output window, operand 0, single buffered']
    %11 = vsyncpa [#allocation9], 0
    %12 = vsyncpa [#allocation12], 0
    %13 = vsyncpa [#allocation10], 0
    // Predicated region
    $region2: #{tpu_custom_call.1} parent=1 // pred_check
      _
    $region3: #{tpu_custom_call.1} parent=1 // pred_check_branch
      %15 = sbr.rel (0) target = $region5
    $region4: #{tpu_custom_call.1} parent=1 // pred_region
      %s16 = sld [smem:[#allocation6]]
      %s18 = ssub.s32 128, 128
      %19 = vsyncadd [#allocation9], %s18
      %s20 = smul.addr %s16, 128
      %s21 = scalar_lea.hbm %s2, %s20
      %s23 = sshll.u32 [#allocation8], 4
      %s24 = int_to_ptr.vmem [resolvable:$true] %s23
      %26 = dma.hbm_to_vmem [thread:$0]  %s21, 128, %s24, [#allocation9]
    $region5: #{tpu_custom_call.1} parent=1 // pred_fallthru
      _
    // Predicated region
    $region6: #{tpu_custom_call.1} parent=1 // pred_check
      _
    $region7: #{tpu_custom_call.1} parent=1 // pred_check_branch
      %28 = sbr.rel (0) target = $region9
    $region8: #{tpu_custom_call.1} parent=1 // pred_region
      %s29 = sld [smem:[#allocation7]]
      %s31 = ssub.s32 128, 128
      %32 = vsyncadd [#allocation12], %s31
      %s33 = smul.addr %s29, 128
      %s34 = scalar_lea.hbm %s3, %s33
      %s36 = sshll.u32 [#allocation11], 4
      %s37 = int_to_ptr.vmem [resolvable:$true] %s36
      %39 = dma.hbm_to_vmem [thread:$0]  %s34, 128, %s37, [#allocation12]
    $region9: #{tpu_custom_call.1} parent=1 // pred_fallthru
      _
    // Predicated region
    $region10: #{tpu_custom_call.1} parent=1 // pred_check
      _
    $region11: #{tpu_custom_call.1} parent=1 // pred_check_branch
      %41 = sbr.rel (0) target = $region13
    $region12: #{tpu_custom_call.1} parent=1 // pred_region
      %42 = dma.done [#allocation9], 128
    $region13: #{tpu_custom_call.1} parent=1 // pred_fallthru
      _
    // Predicated region
    $region14: #{tpu_custom_call.1} parent=1 // pred_check
      _
    $region15: #{tpu_custom_call.1} parent=1 // pred_check_branch
      %44 = sbr.rel (0) target = $region17
    $region16: #{tpu_custom_call.1} parent=1 // pred_region
      %45 = dma.done [#allocation12], 128
    $region17: #{tpu_custom_call.1} parent=1 // pred_fallthru
      _
    %s46 = sld [smem:[#allocation6]]
    %s47 = sld [smem:[#allocation7]]
    %s48 = sld [smem:[#allocation6]]
    %s49 = sld [smem:[#allocation7]]
    %p50 = scmp.eq.s32.totalorder 0, 0
    // Predicated region
    $region18: #{tpu_custom_call.1} parent=1 // pred_check
      %p51 = pneg %p50
    $region19: #{tpu_custom_call.1} parent=1 // pred_check_branch
      %53 = sbr.rel (%p51) target = $region21
    $region20: #{tpu_custom_call.1} parent=1 // pred_region
      %vm54 = vcmask 64512
      %55 = vst.msk [vmem:[#allocation2] sm:$0xff] %vm54, 0.0
      %vm56 = vcmask 7168
      %57 = vst.msk [vmem:[#allocation3] sm:$0xff] %vm56, 0.0
      %vm58 = vcmask 57344
      %59 = vst.msk [vmem:[#allocation4] sm:$0x1] %vm58, 0.0
    $region21: #{tpu_custom_call.1} parent=1 // pred_fallthru
      _
    %v60 = vld [vmem:[#allocation8] sm:$0xff]
    %v61 = vld [vmem:[#allocation11] sm:$0xff]
    %v62 = vld [vmem:[#allocation2] sm:$0xff]
    %63 = vmatprep.subr.mxu0 0.0
    %64 = vmatpush1.xpose.msra.mxu0 %v61
    %65 = vmatprep.subr.mxu0 0.0
    %66 = vmatpush1.xpose.msra.mxu0 0.0
    %67 = vmatprep.subr.mxu0 0.0
    %68 = vmatpush1.xpose.msra.mxu0 0.0
    %69 = vmatprep.subr.mxu0 0.0
    %70 = vmatpush1.xpose.msra.mxu0 0.0
    %71 = vmatprep.subr.mxu0 0.0
    %72 = vmatpush1.xpose.msra.mxu0 0.0
    %73 = vmatprep.subr.mxu0 0.0
    %74 = vmatpush1.xpose.msra.mxu0 0.0
    %75 = vmatprep.subr.mxu0 0.0
    %76 = vmatpush1.xpose.msra.mxu0 0.0
    %77 = vmatprep.subr.mxu0 0.0
    %78 = vmatpush1.xpose.msra.mxu0 0.0
    %79 = vmatprep.subr.mxu0 0.0
    %80 = vmatpush1.xpose.msra.mxu0 0.0
    %81 = vmatprep.subr.mxu0 0.0
    %82 = vmatpush1.xpose.msra.mxu0 0.0
    %83 = vmatprep.subr.mxu0 0.0
    %84 = vmatpush1.xpose.msra.mxu0 0.0
    %85 = vmatprep.subr.mxu0 0.0
    %86 = vmatpush1.xpose.msra.mxu0 0.0
    %87 = vmatprep.subr.mxu0 0.0
    %88 = vmatpush1.xpose.msra.mxu0 0.0
    %89 = vmatprep.subr.mxu0 0.0
    %90 = vmatpush1.xpose.msra.mxu0 0.0
    %91 = vmatprep.subr.mxu0 0.0
    %92 = vmatpush1.xpose.msra.mxu0 0.0
    %93 = vmatprep.subr.mxu0 0.0
    %94 = vmatpush1.xpose.msra.mxu0 0.0
    %95 = vmatprep.subr.mxu0 0.0
    %96 = vmatpush1.xpose.msra.mxu0 0.0
    %97 = vmatprep.subr.mxu0 0.0
    %98 = vmatpush1.xpose.msra.mxu0 0.0
    %99 = vmatprep.subr.mxu0 0.0
    %100 = vmatpush1.xpose.msra.mxu0 0.0
    %101 = vmatprep.subr.mxu0 0.0
    %102 = vmatpush1.xpose.msra.mxu0 0.0
    %103 = vmatprep.subr.mxu0 0.0
    %104 = vmatpush1.xpose.msra.mxu0 0.0
    %105 = vmatprep.subr.mxu0 0.0
    %106 = vmatpush1.xpose.msra.mxu0 0.0
    %107 = vmatprep.subr.mxu0 0.0
    %108 = vmatpush1.xpose.msra.mxu0 0.0
    %109 = vmatprep.subr.mxu0 0.0
    %110 = vmatpush1.xpose.msra.mxu0 0.0
    %111 = vmatprep.subr.mxu0 0.0
    %112 = vmatpush1.xpose.msra.mxu0 0.0
    %113 = vmatprep.subr.mxu0 0.0
    %114 = vmatpush1.xpose.msra.mxu0 0.0
    %115 = vmatprep.subr.mxu0 0.0
    %116 = vmatpush1.xpose.msra.mxu0 0.0
    %117 = vmatprep.subr.mxu0 0.0
    %118 = vmatpush1.xpose.msra.mxu0 0.0
    %119 = vmatprep.subr.mxu0 0.0
    %120 = vmatpush1.xpose.msra.mxu0 0.0
    %121 = vmatprep.subr.mxu0 0.0
    %122 = vmatpush1.xpose.msra.mxu0 0.0
    %123 = vmatprep.subr.mxu0 0.0
    %124 = vmatpush1.xpose.msra.mxu0 0.0
    %125 = vmatprep.subr.mxu0 0.0
    %126 = vmatpush1.xpose.msra.mxu0 0.0
    %127 = vmatprep.mubr.f32.mxu0 0.0
    %128 = vmatmul.mubr.f32.gmra.mrb[0].mxu0 %v60
    %v129 = vpop.f32.mrb[0].mxu0
    %v130 = vadd.f32 0.0, %v129
    %v131 = vpop.f32.mrb[0].mxu0
    %132 = vdwg.mxu0
    %v133 = vadd.f32 %v62, %v130
    %vm134 = vcmask 64512
    %135 = vst.msk [vmem:[#allocation2] sm:$0xff] %vm134, %v133
    %v136 = vld [vmem:[#allocation3] sm:$0xff]
    %v137 = vmul.f32 %v60, %v60
    %138 = vadd.xlane.f32.xlu0 %v137
    %v139 = vpop.xlane.xlu0 %138
    %v140 = vadd.f32 %v136, %v139
    %vm141 = vcmask 7168
    %142 = vst.msk [vmem:[#allocation3] sm:$0xff] %vm141, %v140
    %v143 = vld [vmem:[#allocation4] sm:$0x1]
    %v144 = vmul.f32 %v61, %v61
    %145 = vmatprep.subr.mxu0 0.0
    %146 = vmatpush1.xpose.msra.mxu0 %v144
    %147 = vmatprep.subr.mxu0 0.0
    %148 = vmatpush1.xpose.msra.mxu0 0.0
    %149 = vmatprep.subr.mxu0 0.0
    %150 = vmatpush1.xpose.msra.mxu0 0.0
    %151 = vmatprep.subr.mxu0 0.0
    %152 = vmatpush1.xpose.msra.mxu0 0.0
    %153 = vmatprep.subr.mxu0 0.0
    %154 = vmatpush1.xpose.msra.mxu0 0.0
    %155 = vmatprep.subr.mxu0 0.0
    %156 = vmatpush1.xpose.msra.mxu0 0.0
    %157 = vmatprep.subr.mxu0 0.0
    %158 = vmatpush1.xpose.msra.mxu0 0.0
    %159 = vmatprep.subr.mxu0 0.0
    %160 = vmatpush1.xpose.msra.mxu0 0.0
    %161 = vmatprep.subr.mxu0 0.0
    %162 = vmatpush1.xpose.msra.mxu0 0.0
    %163 = vmatprep.subr.mxu0 0.0
    %164 = vmatpush1.xpose.msra.mxu0 0.0
    %165 = vmatprep.subr.mxu0 0.0
    %166 = vmatpush1.xpose.msra.mxu0 0.0
    %167 = vmatprep.subr.mxu0 0.0
    %168 = vmatpush1.xpose.msra.mxu0 0.0
    %169 = vmatprep.subr.mxu0 0.0
    %170 = vmatpush1.xpose.msra.mxu0 0.0
    %171 = vmatprep.subr.mxu0 0.0
    %172 = vmatpush1.xpose.msra.mxu0 0.0
    %173 = vmatprep.subr.mxu0 0.0
    %174 = vmatpush1.xpose.msra.mxu0 0.0
    %175 = vmatprep.subr.mxu0 0.0
    %176 = vmatpush1.xpose.msra.mxu0 0.0
    %177 = vmatprep.subr.mxu0 0.0
    %178 = vmatpush1.xpose.msra.mxu0 0.0
    %179 = vmatprep.subr.mxu0 0.0
    %180 = vmatpush1.xpose.msra.mxu0 0.0
    %181 = vmatprep.subr.mxu0 0.0
    %182 = vmatpush1.xpose.msra.mxu0 0.0
    %183 = vmatprep.subr.mxu0 0.0
    %184 = vmatpush1.xpose.msra.mxu0 0.0
    %185 = vmatprep.subr.mxu0 0.0
    %186 = vmatpush1.xpose.msra.mxu0 0.0
    %187 = vmatprep.subr.mxu0 0.0
    %188 = vmatpush1.xpose.msra.mxu0 0.0
    %189 = vmatprep.subr.mxu0 0.0
    %190 = vmatpush1.xpose.msra.mxu0 0.0
    %191 = vmatprep.subr.mxu0 0.0
    %192 = vmatpush1.xpose.msra.mxu0 0.0
    %193 = vmatprep.subr.mxu0 0.0
    %194 = vmatpush1.xpose.msra.mxu0 0.0
    %195 = vmatprep.subr.mxu0 0.0
    %196 = vmatpush1.xpose.msra.mxu0 0.0
    %197 = vmatprep.subr.mxu0 0.0
    %198 = vmatpush1.xpose.msra.mxu0 0.0
    %199 = vmatprep.subr.mxu0 0.0
    %200 = vmatpush1.xpose.msra.mxu0 0.0
    %201 = vmatprep.subr.mxu0 0.0
    %202 = vmatpush1.xpose.msra.mxu0 0.0
    %203 = vmatprep.subr.mxu0 0.0
    %204 = vmatpush1.xpose.msra.mxu0 0.0
    %205 = vmatprep.subr.mxu0 0.0
    %206 = vmatpush1.xpose.msra.mxu0 0.0
    %207 = vmatprep.subr.mxu0 0.0
    %208 = vmatpush1.xpose.msra.mxu0 0.0
    %209 = vmatprep.mubr.f32.mxu0 0.0
    %210 = vmatmul.mubr.f32.gmra.mrb[0].mxu0 1.0
    %v211 = vpop.f32.mrb[0].mxu0
    %v212 = vadd.f32 0.0, %v211
    %v213 = vpop.f32.mrb[0].mxu0
    %214 = vdwg.mxu0
    %v215 = vadd.f32 %v143, %v212
    %vm216 = vcmask 57344
    %217 = vst.msk [vmem:[#allocation4] sm:$0x1] %vm216, %v215
    // Predicated region
    $region22: #{tpu_custom_call.1} parent=1 // pred_check
      %p218 = pneg %p50
    $region23: #{tpu_custom_call.1} parent=1 // pred_check_branch
      %220 = sbr.rel (%p218) target = $region25
    $region24: #{tpu_custom_call.1} parent=1 // pred_region
      %v221 = vld [vmem:[#allocation3] sm:$0xff]
      %v222 = vld [vmem:[#allocation4] sm:$0x1]
      %224 = vset.pattern.permute.xlu0 0
      %225 = vperm.xlu0 %224, %v221
      %v226 = vpop.permute.xlu0 %225
      %v229 = vlaneseq
      %v230 = vshrl.u32 %v229, 7
      %v231 = vsub.s32 0, %v230
      %v232 = vrot.slane %v222, %v231
      %v234 = vadd.f32 %v226, %v232
      %v235 = vld [vmem:[#allocation2] sm:$0xff]
      %v236 = vmul.f32 %v235, 2.0
      %v237 = vsub.f32 %v234, %v236
      %v238 = vmax.f32 %v237, 0.0
      %v239 = vrsqrt.pop %v238
      %v240 = vmul.f32 %v238, %v239
      %vm241 = vcmp.eq.f32.partialorder %v238, inf
      %v242 = vsel %vm241, %v238, %v240
      %vm243 = vcmp.eq.f32.partialorder %v238, 0.0
      %v244 = vand.u32 %v238, 2147483648
      %v245 = vsel %vm243, %v244, %v242
      %v246 = vlaneseq
      %v247 = vshrl.u32 %v246, 7
      %v248 = vlaneseq
      %v249 = vand.u32 %v248, 127
      %p250 = scmp.eq.s32.totalorder %s48, %s49
      %vm251 = vcmp.eq.s32.totalorder %v247, %v249
      %s252 = scalar_select %p250, 1, 0
      %v253 = vstv %s252
      %vm254 = vcmp.eq.s32.totalorder %v253, 1
      %vm255 = vmand %vm254, %vm251
      %v256 = vsel %vm255, 0.0, %v245
      %p257 = scmp.gt.s32.totalorder %s49, %s48
      %s258 = scalar_select %p257, 2.0, 1.0
      %v259 = vsel %vm134, %v256, 0.0
      %260 = vadd.xlane.f32.xlu0 %v259
      %v261 = vpop.xlane.xlu0 %260
      %v262 = vrot.slane %v261, 4
      %v263 = vadd.f32 %v261, %v262
      %v264 = vrot.slane %v263, 2
      %v265 = vadd.f32 %v263, %v264
      %v266 = vrot.slane %v265, 1
      %v267 = vadd.f32 %v265, %v266
      %s268 = vtos %v267
      %s269 = smul.f32 %s258, %s268
      %s270 = scalar_lea.smem [#allocation13], 0
      %271 = sst [smem:[%s270]] %s269
    $region25: #{tpu_custom_call.1} parent=1 // pred_fallthru
      _
    // Predicated region
    $region26: #{tpu_custom_call.1} parent=1 // pred_check
      _
    $region27: #{tpu_custom_call.1} parent=1 // pred_check_branch
      %273 = sbr.rel (0) target = $region29
    $region28: #{tpu_custom_call.1} parent=1 // pred_region
      %s275 = ssub.s32 16, 16
      %276 = vsyncadd [#allocation10], %s275
      %279 = dma.smem_to_hbm [#allocation13], 16, %s4, [#allocation10]
    $region29: #{tpu_custom_call.1} parent=1 // pred_fallthru
      _
    // Predicated region
    $region30: #{tpu_custom_call.1} parent=1 // pred_check
      _
    $region31: #{tpu_custom_call.1} parent=1 // pred_check_branch
      %281 = sbr.rel (0) target = $region33
    $region32: #{tpu_custom_call.1} parent=1 // pred_region
      %282 = dma.done [#allocation10], 16
    $region33: #{tpu_custom_call.1} parent=1 // pred_fallthru
      _
    %283 = sfence
    %284 = vsyncpa [#allocation9], 1
    %285 = vsyncpa [#allocation12], 1
    %286 = vsyncpa [#allocation10], 1

</llo_original>
